<compile_context>
chip_gen: v5e
topology: v5e:2x2
jax: 0.10.0
libtpu: 0.0.40
codegen_flags: <defaults>
</compile_context>

<pallas_src>
import functools

import jax
import jax.numpy as jnp
from jax.experimental import pallas as pl
from jax.experimental.pallas import tpu as pltpu


# ----------------------------- Pallas kernel ------------------------------ #
def _virchow2_pool_kernel(tok_ref, out_ref, *, n_prefix):
    # tok_ref: (TB, N, D) block of token sequences; out_ref: (TB, 2*D)
    TB, N, D = tok_ref.shape
    inv_n_patch = 1.0 / float(N - n_prefix)

    # Class token: direct copy (no f32 round trip), full-lane aligned store.
    out_ref[:, :D] = tok_ref[:, 0, :].astype(out_ref.dtype)

    # Patch-token mean = (sum over all tokens - sum over the first n_prefix tokens),
    # accumulated in float32. The prefix slice starts at sublane 0 -> aligned narrow
    # read; no full-tile mask/select temporaries.
    total = jnp.sum(tok_ref[...].astype(jnp.float32), axis=1)                 # (TB, D)
    prefix = jnp.sum(tok_ref[:, :n_prefix, :].astype(jnp.float32), axis=1)    # (TB, D)
    out_ref[:, D:] = ((total - prefix) * inv_n_patch).astype(out_ref.dtype)


def _sublane_tile(dtype):
    # f32 -> 8, bf16 -> 16, int8/fp8 -> 32 sublanes per tile.
    itemsize = jnp.dtype(dtype).itemsize
    return max(8, 32 // max(1, itemsize))


def virchow2_emb_pallas(tokens, *, n_prefix=5):
    """tokens: (B, N, D) base_model output -> (B, 2*D) embedding.

    TB (images per grid step) is sized from an honest, padding-aware VMEM footprint
    (double-buffered input + double-buffered output + f32 working set), the batch is
    padded to a multiple of TB, and vmem_limit_bytes is set explicitly so the choice
    compiles on all of v5e/v6e/v7x.
    """
    B, N, D = tokens.shape
    assert N > n_prefix, "need class token + register tokens + at least 1 patch token"
    assert D % 128 == 0, "D must be a multiple of 128 for full-lane output stores"

    itemsize = jnp.dtype(tokens.dtype).itemsize
    n_pad = -(-N // _sublane_tile(tokens.dtype)) * _sublane_tile(tokens.dtype)

    # Honest per-image footprint: double-buffered padded input block, double-buffered
    # output block, plus an allowance for the f32 reduction working set.
    in_bytes_per_img = n_pad * D * itemsize
    out_bytes_per_img = 2 * D * itemsize
    f32_work_per_img = n_pad * D * 4            # worst case: widened input chunk
    per_img = 2 * in_bytes_per_img + 2 * out_bytes_per_img + f32_work_per_img

    # VMEM capacity (per TensorCore) with a safe fallback.
    try:
        vmem_cap = int(pltpu.get_tpu_info().vmem_capacity_bytes)
    except Exception:
        vmem_cap = 64 * 1024 * 1024             # v7x per-TC capacity: conservative
    target_footprint = min(vmem_cap // 3, 24 * 1024 * 1024)

    # TB: as many images per step as the budget allows...
    max_tb = max(1, target_footprint // per_img)
    tb = min(max_tb, B)
    # ...but prefer >= 4 grid steps (so v7x's 2 TCs each get >= 2 iterations and keep
    # DMA/compute overlap), as long as each step still moves >= ~1 MiB of input.
    if B > 1:
        tb_for_4_steps = max(1, -(-B // 4))
        min_tb_for_bw = max(1, (1 << 20) // max(1, in_bytes_per_img))
        tb = min(tb, max(tb_for_4_steps, min_tb_for_bw))
        tb = max(1, min(tb, max_tb))

    # Pad B up to a multiple of TB (handles prime / awkward batch sizes).
    b_pad = -(-B // tb) * tb
    tokens_p = tokens
    if b_pad != B:
        tokens_p = jnp.pad(tokens, ((0, b_pad - B), (0, 0), (0, 0)))
    grid = (b_pad // tb,)

    # Explicit VMEM limit sized to the real footprint (+25% headroom +1 MiB internal).
    footprint = tb * per_img
    vmem_limit = max(4 * 1024 * 1024, int(footprint * 1.25) + (1 << 20))
    vmem_limit = min(vmem_limit, int(vmem_cap * 0.9))

    kernel = functools.partial(_virchow2_pool_kernel, n_prefix=n_prefix)
    out = pl.pallas_call(
        kernel,
        out_shape=jax.ShapeDtypeStruct((b_pad, 2 * D), tokens.dtype),
        grid_spec=pltpu.PrefetchScalarGridSpec(
            num_scalar_prefetch=0,
            grid=grid,
            in_specs=[pl.BlockSpec((tb, N, D), lambda b: (b, 0, 0))],
            out_specs=pl.BlockSpec((tb, 2 * D), lambda b: (b, 0)),
        ),
        compiler_params=pltpu.CompilerParams(
            dimension_semantics=("parallel",),
            vmem_limit_bytes=vmem_limit,
        ),
    )(tokens_p)
    return out[:B] if b_pad != B else out


# --------------------- deterministic base_model stand-in ------------------- #
# TODO(synk): the real Virchow2 ViT base_model is an external module and is not
# translated here; a deterministic linear patch-embed stand-in supplies tokens.
def synthetic_base_model(image, params):
    """image: (B, C, H, W) NCHW -> tokens (B, 1 + 4 + num_patches, D)."""
    w_patch, prefix_tokens = params            # (C*P*P, D), (5, D)
    B, C, H, W = image.shape
    P = 4                                      # patch size
    x = image.reshape(B, C, H // P, P, W // P, P)
    x = jnp.transpose(x, (0, 2, 4, 1, 3, 5)).reshape(B, (H // P) * (W // P), C * P * P)
    patches = x @ w_patch                      # (B, num_patches, D)
    pref = jnp.broadcast_to(prefix_tokens[None], (B, 5, w_patch.shape[1]))
    return jnp.concatenate([pref, patches], axis=1)   # (B, 5 + num_patches, D)


# --------------------------------- main ------------------------------------ #
if __name__ == "__main__":
    key = jax.random.PRNGKey(0)
    k_img, k_w, k_pref, k_fc_w, k_fc_b = jax.random.split(key, 5)

    # Small shapes consistent with the forward:
    #   image (B, C, H, W) = (4, 3, 16, 16), patch 4 -> 16 patch tokens
    #   hidden D = 128  -> tokens (4, 5 + 16, 128) = (4, 21, 128)
    #   embedding = (4, 256)
    B, C, H, W, D = 4, 3, 16, 16, 128
    P = 4
    image = jax.random.normal(k_img, (B, C, H, W), dtype=jnp.float32)

    w_patch = jax.random.normal(k_w, (C * P * P, D), dtype=jnp.float32) * 0.02
    prefix_tokens = jax.random.normal(k_pref, (5, D), dtype=jnp.float32) * 0.02

    # fc = nn.Linear(2*D, output_dim): initialized (deterministically) but, exactly
    # like the PyTorch forward, NEVER applied to the embedding.
    output_dim = 32
    fc_w = jax.random.normal(k_fc_w, (2 * D, output_dim), dtype=jnp.float32) * 0.02
    fc_b = jax.random.normal(k_fc_b, (output_dim,), dtype=jnp.float32) * 0.02
    del fc_w, fc_b  # unused in forward, matching the reference module

    # "base_model(image)" (glue, plain JAX)
    tokens = synthetic_base_model(image, (w_patch, prefix_tokens))   # (4, 21, 128)

    # Pallas hot path: class token + mean(patch tokens) + concat
    emb = virchow2_emb_pallas(tokens)
    emb = jax.block_until_ready(emb)

    # reference check (plain JAX)
    ref = jnp.concatenate([tokens[:, 0], tokens[:, 5:].mean(axis=1)], axis=-1)
    assert emb.shape == (B, 2 * D)
    assert jnp.allclose(emb, ref, atol=1e-5, rtol=1e-5)

    print("KERNEL_OK")
</pallas_src>

<mosaic_0001>
module attributes {stable_mosaic.version = 11 : i64} {
  func.func @_virchow2_pool_kernel(%arg0: i32, %arg1: memref<4x21x128xf32, #tpu.memory_space<vmem>>, %arg2: memref<4x256xf32, #tpu.memory_space<vmem>>) attributes {dimension_semantics = [#tpu.dimension_semantics<parallel>], iteration_bounds = array<i64: 1>, scalar_prefetch = 0 : i64, scratch_operands = 0 : i64, tpu.core_type = #tpu.core_type<tc>, window_params = [{transform_indices = @transform_0, window_bounds = array<i64: 4, 21, 128>}, {transform_indices = @transform_1, window_bounds = array<i64: 4, 256>}]} {
    %c0 = arith.constant 0 : index
    %c0_0 = arith.constant 0 : index
    %c0_1 = arith.constant 0 : index
    %0 = vector.load %arg1[%c0, %c0_0, %c0_1] : memref<4x21x128xf32, #tpu.memory_space<vmem>>, vector<4x1x128xf32>
    %1 = vector.shape_cast %0 : vector<4x1x128xf32> to vector<4x128xf32>
    %c0_2 = arith.constant 0 : index
    %c0_3 = arith.constant 0 : index
    %2 = vector.load %arg2[%c0_2, %c0_3] : memref<4x256xf32, #tpu.memory_space<vmem>>, vector<4x128xf32>
    tpu.vector_store %arg2[%c0_2, %c0_3], %1 {strides = array<i32>} : memref<4x256xf32, #tpu.memory_space<vmem>>, vector<4x128xf32>,
    %c0_4 = arith.constant 0 : index
    %c0_5 = arith.constant 0 : index
    %c0_6 = arith.constant 0 : index
    %3 = vector.load %arg1[%c0_4, %c0_5, %c0_6] : memref<4x21x128xf32, #tpu.memory_space<vmem>>, vector<4x21x128xf32>
    %cst = arith.constant dense<0.000000e+00> : vector<4x128xf32>
    %4 = vector.multi_reduction <add>, %3, %cst [1] : vector<4x21x128xf32> to vector<4x128xf32>
    %c0_7 = arith.constant 0 : index
    %c0_8 = arith.constant 0 : index
    %c0_9 = arith.constant 0 : index
    %5 = vector.load %arg1[%c0_7, %c0_8, %c0_9] : memref<4x21x128xf32, #tpu.memory_space<vmem>>, vector<4x5x128xf32>
    %cst_10 = arith.constant dense<0.000000e+00> : vector<4x128xf32>
    %6 = vector.multi_reduction <add>, %5, %cst_10 [1] : vector<4x5x128xf32> to vector<4x128xf32>
    %7 = arith.subf %4, %6 : vector<4x128xf32>
    %cst_11 = arith.constant 6.250000e-02 : f32
    %8 = vector.broadcast %cst_11 : f32 to vector<4x128xf32>
    %9 = arith.mulf %7, %8 : vector<4x128xf32>
    %c0_12 = arith.constant 0 : index
    %c128 = arith.constant 128 : index
    %10 = vector.load %arg2[%c0_12, %c128] : memref<4x256xf32, #tpu.memory_space<vmem>>, vector<4x128xf32>
    tpu.vector_store %arg2[%c0_12, %c128], %9 {strides = array<i32>} : memref<4x256xf32, #tpu.memory_space<vmem>>, vector<4x128xf32>,
    return
  }
  func.func @transform_0(%arg0: i32) -> (i32, i32, i32) {
    %c0_i32 = arith.constant 0 : i32
    %c0_i32_0 = arith.constant 0 : i32
    %c0_i32_1 = arith.constant 0 : i32
    return %arg0, %c0_i32, %c0_i32_0 : i32, i32, i32
  }
  func.func @transform_1(%arg0: i32) -> (i32, i32) {
    %c0_i32 = arith.constant 0 : i32
    %c0_i32_0 = arith.constant 0 : i32
    return %arg0, %c0_i32 : i32, i32
  }
}

</mosaic_0001>

<llo_original>
// kernel: tpu_custom_call.1
$region0: #{tpu_custom_call.1}
  #allocation0 [shape = 'u32[]', space=smem, size = 0x4, offset = 0x4, fixed_abs, tag = 'smem constant byte address 0x4 - core index']
  #allocation1 [shape = 'u32[72,128]{1,0:T(1,128)}', space=vmem, size = 0x9000, scoped, tag = 'internal scratch']
  %s0 = inlined_call_operand.vmem [shape: f32[4,21,128], index: 0, kind: input, shape index: {}]
  %s1 = inlined_call_operand.hbm [shape: f32[4,256], index: 1, kind: output, shape index: {}]
  %s2 = sld [smem:[#allocation0]]
  $region14: #{tpu_custom_call.1} parent=0
    _
  %s4 = ssub.s32 1, %s2
  %s5 = scalar_select 0, %s4, %s2
  $region1: #{tpu_custom_call.1} parent=0
    #allocation2 [shape = 'u8[4096]{0}', space=vmem, size = 0x1000, scoped, tag = 'output window, operand 0, single buffered']
    #allocation3 [shape = 's32[1]{0}', space=sflag, size = 0x4, scoped, tag = 'scoped memory for tpu_custom_call.1']
    %6 = vsyncpa [#allocation3], 0
    // Predicated region
    $region2: #{tpu_custom_call.1} parent=1 // pred_check
      _
    $region3: #{tpu_custom_call.1} parent=1 // pred_check_branch
      %8 = sbr.rel (0) target = $region5
    $region4: #{tpu_custom_call.1} parent=1 // pred_region
      _
    $region5: #{tpu_custom_call.1} parent=1 // pred_fallthru
      _
    %v9 = vld [vmem:[%s0] sm:$0x1]
    %v10 = vld [vmem:[%s0 + $0x18] sm:$0x1]
    %v11 = vld [vmem:[%s0 + $0x30] sm:$0x1]
    %v12 = vld [vmem:[%s0 + $0x48] sm:$0x1]
    %v17 = vrot.slane %v10, 7
    %vm18 = vcmask 1041409
    %v19 = vsel %vm18, %v17, %v9
    %vm20 = vcmask 1045509
    %v21 = vsel %vm20, %v17, %v19
    %v22 = vrot.slane %v11, 6
    %vm23 = vcmask 1042434
    %v24 = vsel %vm23, %v22, %v21
    %vm25 = vcmask 1046534
    %v26 = vsel %vm25, %v22, %v24
    %v27 = vrot.slane %v12, 5
    %vm28 = vcmask 1043459
    %v29 = vsel %vm28, %v27, %v26
    %vm30 = vcmask 1047559
    %v31 = vsel %vm30, %v27, %v29
    %33 = vst [vmem:[#allocation2] sm:$0xf] %v31
    %v34 = vld [vmem:[%s0] sm:$0xff]
    %v35 = vld [vmem:[%s0 + $0x8] sm:$0xff]
    %v36 = vld [vmem:[%s0 + $0x10] sm:$0x1f]
    %v37 = vld [vmem:[%s0 + $0x18] sm:$0xff]
    %v38 = vld [vmem:[%s0 + $0x20] sm:$0xff]
    %v39 = vld [vmem:[%s0 + $0x28] sm:$0x1f]
    %v40 = vld [vmem:[%s0 + $0x30] sm:$0xff]
    %v41 = vld [vmem:[%s0 + $0x38] sm:$0xff]
    %v42 = vld [vmem:[%s0 + $0x40] sm:$0x1f]
    %v43 = vld [vmem:[%s0 + $0x48] sm:$0xff]
    %v44 = vld [vmem:[%s0 + $0x50] sm:$0xff]
    %v45 = vld [vmem:[%s0 + $0x58] sm:$0x1f]
    %v46 = vadd.f32 %v34, %v35
    %vm47 = vcmask 1044480
    %v48 = vsel %vm47, %v36, 0.0
    %v49 = vadd.f32 %v46, %v48
    %v50 = vrot.slane %v49, 4
    %v51 = vadd.f32 %v49, %v50
    %v52 = vrot.slane %v51, 2
    %v53 = vadd.f32 %v51, %v52
    %v54 = vrot.slane %v53, 1
    %v55 = vadd.f32 %v53, %v54
    %v56 = vadd.f32 %v37, %v38
    %v57 = vsel %vm47, %v39, 0.0
    %v58 = vadd.f32 %v56, %v57
    %v59 = vrot.slane %v58, 4
    %v60 = vadd.f32 %v58, %v59
    %v61 = vrot.slane %v60, 2
    %v62 = vadd.f32 %v60, %v61
    %v63 = vrot.slane %v62, 1
    %v64 = vadd.f32 %v62, %v63
    %v65 = vadd.f32 %v40, %v41
    %v66 = vsel %vm47, %v42, 0.0
    %v67 = vadd.f32 %v65, %v66
    %v68 = vrot.slane %v67, 4
    %v69 = vadd.f32 %v67, %v68
    %v70 = vrot.slane %v69, 2
    %v71 = vadd.f32 %v69, %v70
    %v72 = vrot.slane %v71, 1
    %v73 = vadd.f32 %v71, %v72
    %v74 = vadd.f32 %v43, %v44
    %v75 = vsel %vm47, %v45, 0.0
    %v76 = vadd.f32 %v74, %v75
    %v77 = vrot.slane %v76, 4
    %v78 = vadd.f32 %v76, %v77
    %v79 = vrot.slane %v78, 2
    %v80 = vadd.f32 %v78, %v79
    %v81 = vrot.slane %v80, 1
    %v82 = vadd.f32 %v80, %v81
    %v83 = vld [vmem:[%s0] sm:$0x1f]
    %v84 = vld [vmem:[%s0 + $0x18] sm:$0x1f]
    %v85 = vld [vmem:[%s0 + $0x30] sm:$0x1f]
    %v86 = vld [vmem:[%s0 + $0x48] sm:$0x1f]
    %v87 = vsel %vm47, %v83, 0.0
    %v88 = vrot.slane %v87, 4
    %v89 = vadd.f32 %v87, %v88
    %v90 = vrot.slane %v89, 2
    %v91 = vadd.f32 %v89, %v90
    %v92 = vrot.slane %v91, 1
    %v93 = vadd.f32 %v91, %v92
    %v94 = vsel %vm47, %v84, 0.0
    %v95 = vrot.slane %v94, 4
    %v96 = vadd.f32 %v94, %v95
    %v97 = vrot.slane %v96, 2
    %v98 = vadd.f32 %v96, %v97
    %v99 = vrot.slane %v98, 1
    %v100 = vadd.f32 %v98, %v99
    %v101 = vsel %vm47, %v85, 0.0
    %v102 = vrot.slane %v101, 4
    %v103 = vadd.f32 %v101, %v102
    %v104 = vrot.slane %v103, 2
    %v105 = vadd.f32 %v103, %v104
    %v106 = vrot.slane %v105, 1
    %v107 = vadd.f32 %v105, %v106
    %v108 = vsel %vm47, %v86, 0.0
    %v109 = vrot.slane %v108, 4
    %v110 = vadd.f32 %v108, %v109
    %v111 = vrot.slane %v110, 2
    %v112 = vadd.f32 %v110, %v111
    %v113 = vrot.slane %v112, 1
    %v114 = vadd.f32 %v112, %v113
    %v115 = vsub.f32 %v55, %v93
    %v116 = vsub.f32 %v64, %v100
    %v117 = vsub.f32 %v73, %v107
    %v118 = vsub.f32 %v82, %v114
    %v119 = vmul.f32 %v115, 0.0625
    %v120 = vmul.f32 %v116, 0.0625
    %v121 = vmul.f32 %v117, 0.0625
    %v122 = vmul.f32 %v118, 0.0625
    %v127 = vrot.slane %v120, 7
    %v128 = vsel %vm18, %v127, %v119
    %v129 = vsel %vm20, %v127, %v128
    %v130 = vrot.slane %v121, 6
    %v131 = vsel %vm23, %v130, %v129
    %v132 = vsel %vm25, %v130, %v131
    %v133 = vrot.slane %v122, 5
    %v134 = vsel %vm28, %v133, %v132
    %v135 = vsel %vm30, %v133, %v134
    %137 = vst [vmem:[#allocation2 + $0x4] sm:$0xf] %v135
    // Predicated region
    $region6: #{tpu_custom_call.1} parent=1 // pred_check
      _
    $region7: #{tpu_custom_call.1} parent=1 // pred_check_branch
      %139 = sbr.rel (0) target = $region9
    $region8: #{tpu_custom_call.1} parent=1 // pred_region
      %141 = vsyncadd [#allocation3], 0
      %s143 = sshll.u32 [#allocation2], 4
      %s144 = int_to_ptr.vmem [resolvable:$true] %s143
      %s145 = sshll.u32 %s1, 4
      %s146 = int_to_ptr.hbm [resolvable:$true] %s145
      %148 = dma.vmem_to_hbm [thread:$0]  %s144, 128, %s146, [#allocation3]
    $region9: #{tpu_custom_call.1} parent=1 // pred_fallthru
      _
    // Predicated region
    $region10: #{tpu_custom_call.1} parent=1 // pred_check
      _
    $region11: #{tpu_custom_call.1} parent=1 // pred_check_branch
      %150 = sbr.rel (0) target = $region13
    $region12: #{tpu_custom_call.1} parent=1 // pred_region
      %152 = dma.done [#allocation3], 128
    $region13: #{tpu_custom_call.1} parent=1 // pred_fallthru
      _
    %153 = vsyncpa [#allocation3], 1

</llo_original>
